<compile_context>
chip_gen: v7x
topology: tpu7x:2x2x1
jax: 0.10.0
libtpu: 0.0.40
codegen_flags: <defaults>
</compile_context>

<pallas_src>
import functools

import jax
import jax.numpy as jnp
from jax.experimental import pallas as pl
from jax.experimental.pallas import tpu as pltpu

D_IN = 300
D_OUT = 4
DEFAULT_TB = 4096  # max rows per grid step; ~9.5 MiB double-buffered (fits v5e)


def _linear_softmax_kernel(x_ref, wt_ref, o_ref):
    # x_ref:  (TB, 300) f32 VMEM tile of the input
    # wt_ref: (300, 4)  f32 VMEM (pre-transposed weight, resident across steps)
    # o_ref:  (TB, 4)   f32 VMEM output tile
    logits = jnp.dot(x_ref[...], wt_ref[...],
                     preferred_element_type=jnp.float32)        # MXU, (TB, 4)
    m = jnp.max(logits, axis=-1, keepdims=True)                 # XLU
    e = jnp.exp(logits - m)                                     # EUP
    denom = jnp.sum(e, axis=-1, keepdims=True)                  # XLU
    o_ref[...] = (e * pl.reciprocal(denom, approx=False)).astype(o_ref.dtype)


def prepare_weight(weight):
    """One-time parameter prep: fold the transpose outside the hot path.

    weight: (4, 300) PyTorch nn.Linear layout  ->  (300, 4) for the kernel.
    """
    return jnp.asarray(weight).T


def _round_up(n, m):
    return ((n + m - 1) // m) * m


@functools.partial(jax.jit, static_argnames=("tb_max",))
def network_forward(x, wt, *, tb_max=DEFAULT_TB):
    """x: (B, 300) f32, wt: (300, 4) f32 (already transposed via prepare_weight)."""
    B, d_in = x.shape
    assert d_in == D_IN and wt.shape == (D_IN, D_OUT)

    # Choose the row tile: split the (8-aligned) batch into the fewest steps
    # of <= tb_max rows, then round each step up to a multiple of 8.  This
    # keeps padding waste below 8 rows per step (no 2x cliff when B is just
    # over a tile boundary) while keeping tiles large enough to amortize the
    # ~0.35 us/step grid overhead.
    b8 = _round_up(B, 8)
    n_steps = -(-b8 // tb_max)                    # ceil div
    tb = _round_up(-(-b8 // n_steps), 8)          # rows per step, 8-aligned
    b_padded = n_steps * tb
    if b_padded != B:
        x = jnp.pad(x, ((0, b_padded - B), (0, 0)))

    out = pl.pallas_call(
        _linear_softmax_kernel,
        out_shape=jax.ShapeDtypeStruct((b_padded, D_OUT), jnp.float32),
        grid_spec=pltpu.PrefetchScalarGridSpec(
            num_scalar_prefetch=0,
            grid=(n_steps,),
            in_specs=[
                pl.BlockSpec((tb, D_IN), lambda i: (i, 0)),     # batch-tiled x
                pl.BlockSpec((D_IN, D_OUT), lambda i: (0, 0)),  # resident weight
            ],
            out_specs=pl.BlockSpec((tb, D_OUT), lambda i: (i, 0)),
        ),
        compiler_params=pltpu.CompilerParams(
            dimension_semantics=("parallel",),   # shard batch steps across TCs (v7x)
        ),
    )(x, wt)

    if b_padded != B:
        out = out[:B]
    return out


if __name__ == "__main__":
    key = jax.random.PRNGKey(0)
    kx, kw = jax.random.split(key)

    B = 8  # small demo batch; kernel tiles/scales to large B automatically

    # Deterministic parameter init (Kaiming-uniform style bound, like nn.Linear)
    bound = 1.0 / (D_IN ** 0.5)
    weight = jax.random.uniform(kw, (D_OUT, D_IN), jnp.float32, -bound, bound)
    x = jax.random.normal(kx, (B, D_IN), jnp.float32)

    # One-time weight prep (transpose folded outside the per-call hot path).
    wt = prepare_weight(weight)

    out = network_forward(x, wt)
    out = jax.block_until_ready(out)

    # Sanity check against a pure-JAX reference.
    ref = jax.nn.softmax(x @ weight.T, axis=1)
    assert out.shape == (B, D_OUT)
    assert jnp.allclose(out, ref, atol=1e-5, rtol=1e-5)

    print("KERNEL_OK")
</pallas_src>

<mosaic_0001>
module attributes {stable_mosaic.version = 11 : i64} {
  func.func @_linear_softmax_kernel(%arg0: i32, %arg1: memref<8x300xf32, #tpu.memory_space<vmem>>, %arg2: memref<300x4xf32, #tpu.memory_space<vmem>>, %arg3: memref<8x4xf32, #tpu.memory_space<vmem>>) attributes {dimension_semantics = [#tpu.dimension_semantics<parallel>], iteration_bounds = array<i64: 1>, scalar_prefetch = 0 : i64, scratch_operands = 0 : i64, tpu.core_type = #tpu.core_type<tc>, window_params = [{transform_indices = @transform_0, window_bounds = array<i64: 8, 300>}, {pipeline_mode = #tpu.pipeline_mode<synchronous>, transform_indices = @transform_1, window_bounds = array<i64: 300, 4>}, {transform_indices = @transform_2, window_bounds = array<i64: 8, 4>}]} {
    %c0 = arith.constant 0 : index
    %c0_0 = arith.constant 0 : index
    %0 = vector.load %arg1[%c0, %c0_0] : memref<8x300xf32, #tpu.memory_space<vmem>>, vector<8x300xf32>
    %c0_1 = arith.constant 0 : index
    %c0_2 = arith.constant 0 : index
    %1 = vector.load %arg2[%c0_1, %c0_2] : memref<300x4xf32, #tpu.memory_space<vmem>>, vector<300x4xf32>
    %cst = arith.constant dense<0.000000e+00> : vector<8x4xf32>
    %2 = tpu.matmul %0, %1, %cst {dimension_numbers = #tpu.dot_dimension_numbers<[1], [0], [0], [1], [0, 0, 1, 1], [], []>} : vector<8x300xf32>, vector<300x4xf32>, vector<8x4xf32> -> vector<8x4xf32>
    %cst_3 = arith.constant dense<0xFF800000> : vector<8xf32>
    %3 = vector.multi_reduction <maximumf>, %2, %cst_3 [1] : vector<8x4xf32> to vector<8xf32>
    %4 = vector.shape_cast %3 : vector<8xf32> to vector<8x1xf32>
    %5 = vector.broadcast %4 : vector<8x1xf32> to vector<8x4xf32>
    %6 = arith.subf %2, %5 : vector<8x4xf32>
    %7 = math.exp %6 : vector<8x4xf32>
    %cst_4 = arith.constant dense<0.000000e+00> : vector<8xf32>
    %8 = vector.multi_reduction <add>, %7, %cst_4 [1] : vector<8x4xf32> to vector<8xf32>
    %9 = vector.shape_cast %8 : vector<8xf32> to vector<8x1xf32>
    %10 = tpu.reciprocal %9 : vector<8x1xf32> -> vector<8x1xf32>
    %11 = vector.broadcast %10 : vector<8x1xf32> to vector<8x4xf32>
    %12 = arith.mulf %7, %11 : vector<8x4xf32>
    %c0_5 = arith.constant 0 : index
    %c0_6 = arith.constant 0 : index
    %13 = vector.load %arg3[%c0_5, %c0_6] : memref<8x4xf32, #tpu.memory_space<vmem>>, vector<8x4xf32>
    tpu.vector_store %arg3[%c0_5, %c0_6], %12 {strides = array<i32>} : memref<8x4xf32, #tpu.memory_space<vmem>>, vector<8x4xf32>,
    return
  }
  func.func @transform_0(%arg0: i32) -> (i32, i32) {
    %c0_i32 = arith.constant 0 : i32
    %c0_i32_0 = arith.constant 0 : i32
    return %arg0, %c0_i32 : i32, i32
  }
  func.func @transform_1(%arg0: i32) -> (i32, i32) {
    %c0_i32 = arith.constant 0 : i32
    %c0_i32_0 = arith.constant 0 : i32
    %c0_i32_1 = arith.constant 0 : i32
    return %c0_i32, %c0_i32_0 : i32, i32
  }
  func.func @transform_2(%arg0: i32) -> (i32, i32) {
    %c0_i32 = arith.constant 0 : i32
    %c0_i32_0 = arith.constant 0 : i32
    return %arg0, %c0_i32 : i32, i32
  }
}

</mosaic_0001>

<llo_original>
// kernel: network_forward.1
$region0: #{network_forward.1}
  #allocation0 [shape = 'u32[]', space=smem, size = 0x4, offset = 0x4, fixed_abs, tag = 'smem constant byte address 0x4 - core index']
  #allocation1 [shape = 'u32[144,128]{1,0:T(1,128)}', space=vmem, size = 0x12000, scoped, tag = 'internal scratch']
  %s0 = inlined_call_operand.vmem [shape: f32[8,300], index: 0, kind: input, shape index: {}]
  %s1 = inlined_call_operand.vmem [shape: f32[300,4], index: 1, kind: input, shape index: {}]
  %s2 = inlined_call_operand.vmem [shape: f32[8,4], index: 2, kind: output, shape index: {}]
  %s3 = sld [smem:[#allocation0]]
  $region18: #{network_forward.1} parent=0
    _
  %s5 = ssub.s32 1, %s3
  %s6 = scalar_select 0, %s5, %s3
  // Predicated region
  $region2: #{network_forward.1} parent=0 // pred_check
    _
  $region3: #{network_forward.1} parent=0 // pred_check_branch
    %8 = sbr.rel (0) target = $region5
  $region4: #{network_forward.1} parent=0 // pred_region
    _
  $region5: #{network_forward.1} parent=0 // pred_fallthru
    _
  // Predicated region
  $region6: #{network_forward.1} parent=0 // pred_check
    _
  $region7: #{network_forward.1} parent=0 // pred_check_branch
    %10 = sbr.rel (0) target = $region9
  $region8: #{network_forward.1} parent=0 // pred_region
    _
  $region9: #{network_forward.1} parent=0 // pred_fallthru
    _
  %v11 = vld [vmem:[%s0] sm:$0xff]
  %v12 = vld [vmem:[%s0 + $0x8] sm:$0xff]
  %v13 = vld [vmem:[%s0 + $0x10] sm:$0xff]
  %v14 = vld [vmem:[%s1] sm:$0xff]
  %v15 = vld [vmem:[%s1 + $0x8] sm:$0xff]
  %v16 = vld [vmem:[%s1 + $0x10] sm:$0xff]
  %v17 = vld [vmem:[%s1 + $0x18] sm:$0xff]
  %v18 = vld [vmem:[%s1 + $0x20] sm:$0xff]
  %v19 = vld [vmem:[%s1 + $0x28] sm:$0xff]
  %v20 = vld [vmem:[%s1 + $0x30] sm:$0xff]
  %v21 = vld [vmem:[%s1 + $0x38] sm:$0xff]
  %v22 = vld [vmem:[%s1 + $0x40] sm:$0xff]
  %v23 = vld [vmem:[%s1 + $0x48] sm:$0xff]
  %v24 = vld [vmem:[%s1 + $0x50] sm:$0xff]
  %v25 = vld [vmem:[%s1 + $0x58] sm:$0xff]
  %v26 = vld [vmem:[%s1 + $0x60] sm:$0xff]
  %v27 = vld [vmem:[%s1 + $0x68] sm:$0xff]
  %v28 = vld [vmem:[%s1 + $0x70] sm:$0xff]
  %v29 = vld [vmem:[%s1 + $0x78] sm:$0xff]
  %v30 = vld [vmem:[%s1 + $0x80] sm:$0xff]
  %v31 = vld [vmem:[%s1 + $0x88] sm:$0xff]
  %v32 = vld [vmem:[%s1 + $0x90] sm:$0xff]
  %v33 = vld [vmem:[%s1 + $0x98] sm:$0xff]
  %v34 = vld [vmem:[%s1 + $0xa0] sm:$0xff]
  %v35 = vld [vmem:[%s1 + $0xa8] sm:$0xff]
  %v36 = vld [vmem:[%s1 + $0xb0] sm:$0xff]
  %v37 = vld [vmem:[%s1 + $0xb8] sm:$0xff]
  %v38 = vld [vmem:[%s1 + $0xc0] sm:$0xff]
  %v39 = vld [vmem:[%s1 + $0xc8] sm:$0xff]
  %v40 = vld [vmem:[%s1 + $0xd0] sm:$0xff]
  %v41 = vld [vmem:[%s1 + $0xd8] sm:$0xff]
  %v42 = vld [vmem:[%s1 + $0xe0] sm:$0xff]
  %v43 = vld [vmem:[%s1 + $0xe8] sm:$0xff]
  %v44 = vld [vmem:[%s1 + $0xf0] sm:$0xff]
  %v45 = vld [vmem:[%s1 + $0xf8] sm:$0xff]
  %v46 = vld [vmem:[%s1 + $0x100] sm:$0xff]
  %v47 = vld [vmem:[%s1 + $0x108] sm:$0xff]
  %v48 = vld [vmem:[%s1 + $0x110] sm:$0xff]
  %v49 = vld [vmem:[%s1 + $0x118] sm:$0xff]
  %v50 = vld [vmem:[%s1 + $0x120] sm:$0xff]
  %v51 = vld [vmem:[%s1 + $0x128] sm:$0xf]
  %vm52 = vcmask 359424
  %v54 = vsel %vm52, %v13, 0
  %vm56 = vcmask 1043456
  %v58 = vsel %vm56, %v51, 0
  %60 = vmatprep.subr.mxu0 0.0
  %61 = vmatpush1.msra.mxu0 %v14
  %62 = vmatprep.subr.mxu0 0.0
  %63 = vmatpush1.msra.mxu0 %v15
  %64 = vmatprep.subr.mxu0 0.0
  %65 = vmatpush1.msra.mxu0 %v16
  %66 = vmatprep.subr.mxu0 0.0
  %67 = vmatpush1.msra.mxu0 %v17
  %68 = vmatprep.subr.mxu0 0.0
  %69 = vmatpush1.msra.mxu0 %v18
  %70 = vmatprep.subr.mxu0 0.0
  %71 = vmatpush1.msra.mxu0 %v19
  %72 = vmatprep.subr.mxu0 0.0
  %73 = vmatpush1.msra.mxu0 %v20
  %74 = vmatprep.subr.mxu0 0.0
  %75 = vmatpush1.msra.mxu0 %v21
  %76 = vmatprep.subr.mxu0 0.0
  %77 = vmatpush1.msra.mxu0 %v22
  %78 = vmatprep.subr.mxu0 0.0
  %79 = vmatpush1.msra.mxu0 %v23
  %80 = vmatprep.subr.mxu0 0.0
  %81 = vmatpush1.msra.mxu0 %v24
  %82 = vmatprep.subr.mxu0 0.0
  %83 = vmatpush1.msra.mxu0 %v25
  %84 = vmatprep.subr.mxu0 0.0
  %85 = vmatpush1.msra.mxu0 %v26
  %86 = vmatprep.subr.mxu0 0.0
  %87 = vmatpush1.msra.mxu0 %v27
  %88 = vmatprep.subr.mxu0 0.0
  %89 = vmatpush1.msra.mxu0 %v28
  %90 = vmatprep.subr.mxu0 0.0
  %91 = vmatpush1.msra.mxu0 %v29
  %92 = vmatprep.subr.mxu0 0.0
  %93 = vmatpush1.msra.mxu0 %v30
  %94 = vmatprep.subr.mxu0 0.0
  %95 = vmatpush1.msra.mxu0 %v31
  %96 = vmatprep.subr.mxu0 0.0
  %97 = vmatpush1.msra.mxu0 %v32
  %98 = vmatprep.subr.mxu0 0.0
  %99 = vmatpush1.msra.mxu0 %v33
  %100 = vmatprep.subr.mxu0 0.0
  %101 = vmatpush1.msra.mxu0 %v34
  %102 = vmatprep.subr.mxu0 0.0
  %103 = vmatpush1.msra.mxu0 %v35
  %104 = vmatprep.subr.mxu0 0.0
  %105 = vmatpush1.msra.mxu0 %v36
  %106 = vmatprep.subr.mxu0 0.0
  %107 = vmatpush1.msra.mxu0 %v37
  %108 = vmatprep.subr.mxu0 0.0
  %109 = vmatpush1.msra.mxu0 %v38
  %110 = vmatprep.subr.mxu0 0.0
  %111 = vmatpush1.msra.mxu0 %v39
  %112 = vmatprep.subr.mxu0 0.0
  %113 = vmatpush1.msra.mxu0 %v40
  %114 = vmatprep.subr.mxu0 0.0
  %115 = vmatpush1.msra.mxu0 %v41
  %116 = vmatprep.subr.mxu0 0.0
  %117 = vmatpush1.msra.mxu0 %v42
  %118 = vmatprep.subr.mxu0 0.0
  %119 = vmatpush1.msra.mxu0 %v43
  %120 = vmatprep.subr.mxu0 0.0
  %121 = vmatpush1.msra.mxu0 %v44
  %122 = vmatprep.subr.mxu0 0.0
  %123 = vmatpush1.msra.mxu0 %v45
  %124 = vmatprep.mubr.f32.mxu0 %v12
  %125 = vmatmul.mubr.f32.gmra.mrb[0].mxu0 %v11
  %v126 = vpop.f32.mrb[0].mxu0
  %v127 = vadd.f32 0.0, %v126
  %v128 = vpop.f32.mrb[0].mxu0
  %129 = vdwg.mxu0
  %130 = vmatprep.subr.mxu0 0.0
  %131 = vmatpush1.msra.mxu0 %v46
  %132 = vmatprep.subr.mxu0 0.0
  %133 = vmatpush1.msra.mxu0 %v47
  %134 = vmatprep.subr.mxu0 0.0
  %135 = vmatpush1.msra.mxu0 %v48
  %136 = vmatprep.subr.mxu0 0.0
  %137 = vmatpush1.msra.mxu0 %v49
  %138 = vmatprep.subr.mxu0 0.0
  %139 = vmatpush1.msra.mxu0 %v50
  %140 = vmatprep.subr.mxu0 0.0
  %141 = vmatpush1.msra.mxu0 %v58
  %142 = vmatprep.subr.mxu0 0.0
  %143 = vmatpush1.msra.mxu0 0.0
  %144 = vmatprep.subr.mxu0 0.0
  %145 = vmatpush1.msra.mxu0 0.0
  %146 = vmatprep.subr.mxu0 0.0
  %147 = vmatpush1.msra.mxu0 0.0
  %148 = vmatprep.subr.mxu0 0.0
  %149 = vmatpush1.msra.mxu0 0.0
  %150 = vmatprep.subr.mxu0 0.0
  %151 = vmatpush1.msra.mxu0 0.0
  %152 = vmatprep.subr.mxu0 0.0
  %153 = vmatpush1.msra.mxu0 0.0
  %154 = vmatprep.subr.mxu0 0.0
  %155 = vmatpush1.msra.mxu0 0.0
  %156 = vmatprep.subr.mxu0 0.0
  %157 = vmatpush1.msra.mxu0 0.0
  %158 = vmatprep.subr.mxu0 0.0
  %159 = vmatpush1.msra.mxu0 0.0
  %160 = vmatprep.subr.mxu0 0.0
  %161 = vmatpush1.msra.mxu0 0.0
  %162 = vmatprep.subr.mxu0 0.0
  %163 = vmatpush1.msra.mxu0 0.0
  %164 = vmatprep.subr.mxu0 0.0
  %165 = vmatpush1.msra.mxu0 0.0
  %166 = vmatprep.subr.mxu0 0.0
  %167 = vmatpush1.msra.mxu0 0.0
  %168 = vmatprep.subr.mxu0 0.0
  %169 = vmatpush1.msra.mxu0 0.0
  %170 = vmatprep.subr.mxu0 0.0
  %171 = vmatpush1.msra.mxu0 0.0
  %172 = vmatprep.subr.mxu0 0.0
  %173 = vmatpush1.msra.mxu0 0.0
  %174 = vmatprep.subr.mxu0 0.0
  %175 = vmatpush1.msra.mxu0 0.0
  %176 = vmatprep.subr.mxu0 0.0
  %177 = vmatpush1.msra.mxu0 0.0
  %178 = vmatprep.subr.mxu0 0.0
  %179 = vmatpush1.msra.mxu0 0.0
  %180 = vmatprep.subr.mxu0 0.0
  %181 = vmatpush1.msra.mxu0 0.0
  %182 = vmatprep.subr.mxu0 0.0
  %183 = vmatpush1.msra.mxu0 0.0
  %184 = vmatprep.subr.mxu0 0.0
  %185 = vmatpush1.msra.mxu0 0.0
  %186 = vmatprep.subr.mxu0 0.0
  %187 = vmatpush1.msra.mxu0 0.0
  %188 = vmatprep.subr.mxu0 0.0
  %189 = vmatpush1.msra.mxu0 0.0
  %190 = vmatprep.subr.mxu0 0.0
  %191 = vmatpush1.msra.mxu0 0.0
  %192 = vmatprep.subr.mxu0 0.0
  %193 = vmatpush1.msra.mxu0 0.0
  %194 = vmatprep.mubr.f32.mxu0 0.0
  %195 = vmatmul.mubr.f32.gmra.mrb[0].mxu0 %v54
  %v196 = vpop.f32.mrb[0].mxu0
  %v197 = vadd.f32 %v127, %v196
  %v198 = vpop.f32.mrb[0].mxu0
  %199 = vdwg.mxu0
  %vm200 = vcmask 31744
  %v201 = vsel %vm200, %v197, -inf
  %202 = vmax.xlane.f32.xlu0 %v201
  %v203 = vpop.xlane.xlu0 %202
  %v204 = vsub.f32 %v197, %v203
  %v205 = vmul.f32 %v204, 1.442695
  %v206 = vpow.pop %v205
  %v207 = vsel %vm200, %v206, 0.0
  %208 = vadd.xlane.f32.xlu0 %v207
  %v209 = vpop.xlane.xlu0 %208
  %v210 = vrcp.pop %v209
  %v211 = vmul.f32 %v206, %v210
  %212 = vst.msk [vmem:[%s2] sm:$0xff] %vm200, %v211
  // Predicated region
  $region10: #{network_forward.1} parent=0 // pred_check
    _
  $region11: #{network_forward.1} parent=0 // pred_check_branch
    %214 = sbr.rel (0) target = $region13
  $region12: #{network_forward.1} parent=0 // pred_region
    _
  $region13: #{network_forward.1} parent=0 // pred_fallthru
    _
  // Predicated region
  $region14: #{network_forward.1} parent=0 // pred_check
    _
  $region15: #{network_forward.1} parent=0 // pred_check_branch
    %216 = sbr.rel (0) target = $region17
  $region16: #{network_forward.1} parent=0 // pred_region
    _
  $region17: #{network_forward.1} parent=0 // pred_fallthru
    _

</llo_original>
